<compile_context>
chip_gen: v7x
topology: tpu7x:2x2x1
jax: 0.10.0
libtpu: 0.0.40
codegen_flags: <defaults>
</compile_context>

<pallas_src>
import jax
import jax.numpy as jnp
from jax.experimental import pallas as pl
from jax.experimental.pallas import tpu as pltpu


def stop_cost_kernel(w_ref, mv_ref, vels_ref, out_ref):
    # w_ref:    (1,)        SMEM  weight
    # mv_ref:   (H, 1)      VMEM  max_vel (constant block index -> fetched once)
    # vels_ref: (tb, H, D)  VMEM  natural-layout velocity block (f32 or bf16)
    # out_ref:  (tb, H)     VMEM  cost block
    w = w_ref[0]
    v = vels_ref[...].astype(jnp.float32)          # bf16 -> f32 upcast (no-op for f32)
    mv = mv_ref[...][None, :, :]                   # (1, H, 1) broadcasts over (tb, ., D)
    excess = jnp.maximum(jnp.abs(v) - mv, 0.0)     # relu(|v| - max_vel)
    out_ref[...] = w * jnp.sum(excess * excess, axis=-1)


def _pick_batch_tile(B, H):
    """Rollouts per block: multiple of 8 (output sublane alignment), >= 2 grid steps
    whenever possible (pipelining / v7x megacore), bounded lane-padded VMEM (~2 MiB)."""
    if B <= 8:
        return B                                     # single full block (tiny problems)
    bytes_per_row = pl.cdiv(H, 8) * 8 * 128 * 4      # lane-padded f32 upper bound
    rows_cap = max(8, (2 << 20) // bytes_per_row)
    tb = min(rows_cap, max(8, B // 2))               # guarantees >= 2 grid steps
    return max(8, (tb // 8) * 8)


def stop_cost(vels, max_vel, weight):
    """vels: (B,H,D) f32/bf16, max_vel: (H,1) f32, weight: (1,) f32 -> cost (B,H) f32."""
    B, H, D = vels.shape
    max_vel = max_vel.astype(jnp.float32).reshape(H, 1)     # init-time-sized, tiny
    weight = jnp.asarray(weight, jnp.float32).reshape(1)

    tb = _pick_batch_tile(B, H)
    grid = (pl.cdiv(B, tb),)                                 # no padding: partial last block is clipped

    return pl.pallas_call(
        stop_cost_kernel,
        out_shape=jax.ShapeDtypeStruct((B, H), jnp.float32),
        grid=grid,
        in_specs=[
            pl.BlockSpec(memory_space=pltpu.MemorySpace.SMEM),   # weight (1,) scalar
            pl.BlockSpec((H, 1), lambda b: (0, 0)),              # max_vel, VMEM-resident
            pl.BlockSpec((tb, H, D), lambda b: (b, 0, 0)),       # vels, natural layout
        ],
        out_specs=pl.BlockSpec((tb, H), lambda b: (b, 0)),
        compiler_params=pltpu.CompilerParams(
            dimension_semantics=("parallel",),                   # 2 TCs on v7x; harmless elsewhere
        ),
        cost_estimate=pl.CostEstimate(
            flops=6 * B * H * D,
            transcendentals=0,
            bytes_accessed=B * H * D * vels.dtype.itemsize + H * 4 + B * H * 4,
        ),
    )(weight, max_vel, vels)


def build_max_vel(traj_dt, max_nlimit):
    """Init-time glue (matches __init__): (tril(ones).T @ (dt * limit)).unsqueeze(-1)."""
    H = traj_dt.shape[0]
    sum_matrix = jnp.tril(jnp.ones((H, H), dtype=jnp.float32)).T
    delta_vel = traj_dt * max_nlimit
    return (sum_matrix @ delta_vel)[:, None]                 # (H, 1)


if __name__ == "__main__":
    # Small deterministic problem: batch=20 rollouts (3 grid steps incl. a partial
    # final block -> exercises the pad-free path), horizon=8, dof=4.
    B, H, D = 20, 8, 4
    key = jax.random.PRNGKey(0)
    vels = (jax.random.normal(key, (B, H, D), dtype=jnp.float32) * 2.0).astype(jnp.bfloat16)

    traj_dt = jnp.full((H,), 0.05, dtype=jnp.float32)
    max_nlimit = 1.5
    weight_val = 1.0

    max_vel = build_max_vel(traj_dt, max_nlimit)            # (H, 1), init-time
    weight = jnp.array([weight_val], dtype=jnp.float32)     # (1,)

    cost = jax.block_until_ready(stop_cost(vels, max_vel, weight))

    # Pure-JAX reference on the same bf16-rounded inputs, f32 math
    # (GaussianProjection({}) == identity).
    v32 = vels.astype(jnp.float32)
    ref = weight_val * jnp.sum(
        jnp.square(jnp.maximum(jnp.abs(v32) - max_vel[None, :, :], 0.0)), axis=-1
    )
    assert cost.shape == (B, H)
    assert cost.dtype == jnp.float32
    assert jnp.allclose(cost, ref, atol=1e-4, rtol=1e-4)

    print("KERNEL_OK")
</pallas_src>

<mosaic_0001>
module attributes {stable_mosaic.version = 11 : i64} {
  func.func @stop_cost_kernel(%arg0: i32, %arg1: memref<1xf32, #tpu.memory_space<smem>>, %arg2: memref<8x1xf32, #tpu.memory_space<vmem>>, %arg3: memref<8x8x4xbf16, #tpu.memory_space<vmem>>, %arg4: memref<8x8xf32, #tpu.memory_space<vmem>>) attributes {dimension_semantics = [#tpu.dimension_semantics<parallel>], iteration_bounds = array<i64: 3>, scalar_prefetch = 0 : i64, scratch_operands = 0 : i64, tpu.core_type = #tpu.core_type<tc>, window_params = [{transform_indices = @transform_0, window_bounds = array<i64: 1>}, {pipeline_mode = #tpu.pipeline_mode<synchronous>, transform_indices = @transform_1, window_bounds = array<i64: 8, 1>}, {transform_indices = @transform_2, window_bounds = array<i64: 8, 8, 4>}, {transform_indices = @transform_3, window_bounds = array<i64: 8, 8>}]} {
    %c0 = arith.constant 0 : index
    %0 = memref.load %arg1[%c0] : memref<1xf32, #tpu.memory_space<smem>>
    %c0_0 = arith.constant 0 : index
    %c0_1 = arith.constant 0 : index
    %c0_2 = arith.constant 0 : index
    %1 = vector.load %arg3[%c0_0, %c0_1, %c0_2] : memref<8x8x4xbf16, #tpu.memory_space<vmem>>, vector<8x8x4xbf16>
    %2 = arith.extf %1 : vector<8x8x4xbf16> to vector<8x8x4xf32>
    %c0_3 = arith.constant 0 : index
    %c0_4 = arith.constant 0 : index
    %3 = vector.load %arg2[%c0_3, %c0_4] : memref<8x1xf32, #tpu.memory_space<vmem>>, vector<8x1xf32>
    %4 = vector.shape_cast %3 : vector<8x1xf32> to vector<1x8x1xf32>
    %5 = math.absf %2 : vector<8x8x4xf32>
    %6 = vector.broadcast %4 : vector<1x8x1xf32> to vector<8x8x4xf32>
    %7 = arith.subf %5, %6 : vector<8x8x4xf32>
    %cst = arith.constant 0.000000e+00 : f32
    %8 = vector.broadcast %cst : f32 to vector<8x8x4xf32>
    %9 = arith.maximumf %7, %8 : vector<8x8x4xf32>
    %10 = arith.mulf %9, %9 : vector<8x8x4xf32>
    %cst_5 = arith.constant dense<0.000000e+00> : vector<8x8xf32>
    %11 = vector.multi_reduction <add>, %10, %cst_5 [2] : vector<8x8x4xf32> to vector<8x8xf32>
    %12 = vector.broadcast %0 : f32 to vector<8x8xf32>
    %13 = arith.mulf %12, %11 : vector<8x8xf32>
    %c0_6 = arith.constant 0 : index
    %c0_7 = arith.constant 0 : index
    %14 = vector.load %arg4[%c0_6, %c0_7] : memref<8x8xf32, #tpu.memory_space<vmem>>, vector<8x8xf32>
    tpu.vector_store %arg4[%c0_6, %c0_7], %13 {strides = array<i32>} : memref<8x8xf32, #tpu.memory_space<vmem>>, vector<8x8xf32>,
    return
  }
  func.func @transform_0(%arg0: i32) -> i32 {
    %c0_i32 = arith.constant 0 : i32
    %c0_i32_0 = arith.constant 0 : i32
    return %c0_i32 : i32
  }
  func.func @transform_1(%arg0: i32) -> (i32, i32) {
    %c0_i32 = arith.constant 0 : i32
    %c0_i32_0 = arith.constant 0 : i32
    %c0_i32_1 = arith.constant 0 : i32
    return %c0_i32, %c0_i32_0 : i32, i32
  }
  func.func @transform_2(%arg0: i32) -> (i32, i32, i32) {
    %c0_i32 = arith.constant 0 : i32
    %c0_i32_0 = arith.constant 0 : i32
    %c0_i32_1 = arith.constant 0 : i32
    return %arg0, %c0_i32, %c0_i32_0 : i32, i32, i32
  }
  func.func @transform_3(%arg0: i32) -> (i32, i32) {
    %c0_i32 = arith.constant 0 : i32
    %c0_i32_0 = arith.constant 0 : i32
    return %arg0, %c0_i32 : i32, i32
  }
}

</mosaic_0001>

<llo_original>
// kernel: tpu_custom_call.1
$region0: #{tpu_custom_call.1}
  #allocation0 [shape = 'u32[]', space=smem, size = 0x4, offset = 0x4, fixed_abs, tag = 'smem constant byte address 0x4 - core index']
  #allocation1 [shape = 'u32[144,128]{1,0:T(1,128)}', space=vmem, size = 0x12000, scoped, tag = 'internal scratch']
  #allocation2 [shape = 'f32[1]{0:T(128)S(6)}', space=smem, size = 0x200, scoped, tag = 'scoped memory for tpu_custom_call.1']
  %s0 = inlined_call_operand.<no memory space> [shape: f32[1], index: 0, kind: input, shape index: {}]
  %s1 = inlined_call_operand.vmem [shape: f32[8,1], index: 1, kind: input, shape index: {}]
  %s2 = inlined_call_operand.vmem [shape: bf16[20,8,4], index: 2, kind: input, shape index: {}]
  %s3 = inlined_call_operand.vmem [shape: f32[20,8], index: 3, kind: output, shape index: {}]
  %s4 = sld [smem:[#allocation0]]
  $region45: #{tpu_custom_call.1} parent=0
    _
  %s6 = ssub.s32 1, %s4
  %s7 = scalar_select 0, %s6, %s4
  %8 = sst [smem:[#allocation2]] %s0
  loop: start=0, step=1, limit=5
  $region2: #{tpu_custom_call.1} parent=0 // loop_pre_header
    _
  $region3: #{tpu_custom_call.1} parent=0 // loop_header
    %s10 = sphi 0, %s14
    %p11 = scmp.ge.s32.totalorder %s10, 5
    %s18 = sphi 0, %s18
    %s20 = sphi 0, %s18
    %s21 = sphi 0, %s20
    %s35 = sphi 0, %s21
    %s39 = sphi 0, %s39
    %s41 = sphi 0, %s39
    %s42 = sphi 0, %s41
    %s56 = sphi 0, %s42
    %s62 = sphi 0, %s64
    %s65 = sphi 0, %s62
    %s66 = sphi 0, %s65
    %s82 = sphi 0, %s66
    %s88 = sphi 0, %s90
    %s91 = sphi 0, %s88
    %s92 = sphi 0, %s91
    %s108 = sphi 0, %s92
  $region4: #{tpu_custom_call.1} parent=0 // loop_header_branch
    %13 = sbr.rel (%p11) target = $region8
  $region5: #{tpu_custom_call.1} parent=0 // loop_body
    %s15 = ssub.s32 %s10, 1
    %s16 = ssub.s32 %s10, 2
    %s17 = sadd.s32 %s10, 1
    %s19 = sadd.s32 %s18, 1
    %p22 = scmp.eq.s32.totalorder %s10, 2
    %p23 = scmp.ne.s32.totalorder %s18, %s20
    %p24 = scmp.eq.s32.totalorder %s10, 0
    %p25 = por %p23, %p24
    %p26 = scmp.ne.s32.totalorder %s18, %s20
    %p27 = scmp.eq.s32.totalorder %s15, 2
    %p28 = por %p26, %p27
    %p29 = scmp.ne.s32.totalorder %s20, %s21
    %p30 = scmp.eq.s32.totalorder %s15, 0
    %p31 = por %p29, %p30
    %p32 = scmp.ne.s32.totalorder %s20, %s21
    %p33 = scmp.eq.s32.totalorder %s16, 2
    %p34 = por %p32, %p33
    %p36 = scmp.ne.s32.totalorder %s21, %s35
    %p37 = scmp.eq.s32.totalorder %s16, 0
    %p38 = por %p36, %p37
    %s40 = sadd.s32 %s39, 1
    %p43 = scmp.eq.s32.totalorder %s10, 2
    %p44 = scmp.ne.s32.totalorder %s39, %s41
    %p45 = scmp.eq.s32.totalorder %s10, 0
    %p46 = por %p44, %p45
    %p47 = scmp.ne.s32.totalorder %s39, %s41
    %p48 = scmp.eq.s32.totalorder %s15, 2
    %p49 = por %p47, %p48
    %p50 = scmp.ne.s32.totalorder %s41, %s42
    %p51 = scmp.eq.s32.totalorder %s15, 0
    %p52 = por %p50, %p51
    %p53 = scmp.ne.s32.totalorder %s41, %s42
    %p54 = scmp.eq.s32.totalorder %s16, 2
    %p55 = por %p53, %p54
    %p57 = scmp.ne.s32.totalorder %s42, %s56
    %p58 = scmp.eq.s32.totalorder %s16, 0
    %p59 = por %p57, %p58
    %s60 = ssub.s32 %s10, %s17
    %p61 = scmp.eq.s32.totalorder %s60, 0
    %s63 = sadd.s32 %s62, 1
    %s64 = scalar_select %p61, %s62, %s63
    %p67 = pneg %p61
    %p68 = scmp.eq.s32.totalorder %s10, 2
    %p69 = por %p67, %p68
    %p70 = scmp.ne.s32.totalorder %s62, %s65
    %p71 = scmp.eq.s32.totalorder %s10, 0
    %p72 = por %p70, %p71
    %p73 = scmp.ne.s32.totalorder %s62, %s65
    %p74 = scmp.eq.s32.totalorder %s15, 2
    %p75 = por %p73, %p74
    %p76 = scmp.ne.s32.totalorder %s65, %s66
    %p77 = scmp.eq.s32.totalorder %s15, 0
    %p78 = por %p76, %p77
    %p79 = scmp.ne.s32.totalorder %s65, %s66
    %p80 = scmp.eq.s32.totalorder %s16, 2
    %p81 = por %p79, %p80
    %p83 = scmp.ne.s32.totalorder %s66, %s82
    %p84 = scmp.eq.s32.totalorder %s16, 0
    %p85 = por %p83, %p84
    %s86 = ssub.s32 %s10, %s17
    %p87 = scmp.eq.s32.totalorder %s86, 0
    %s89 = sadd.s32 %s88, 1
    %s90 = scalar_select %p87, %s88, %s89
    %p93 = pneg %p87
    %p94 = scmp.eq.s32.totalorder %s10, 2
    %p95 = por %p93, %p94
    %p96 = scmp.ne.s32.totalorder %s88, %s91
    %p97 = scmp.eq.s32.totalorder %s10, 0
    %p98 = por %p96, %p97
    %p99 = scmp.ne.s32.totalorder %s88, %s91
    %p100 = scmp.eq.s32.totalorder %s15, 2
    %p101 = por %p99, %p100
    %p102 = scmp.ne.s32.totalorder %s91, %s92
    %p103 = scmp.eq.s32.totalorder %s15, 0
    %p104 = por %p102, %p103
    %p105 = scmp.ne.s32.totalorder %s91, %s92
    %p106 = scmp.eq.s32.totalorder %s16, 2
    %p107 = por %p105, %p106
    %p109 = scmp.ne.s32.totalorder %s92, %s108
    %p110 = scmp.eq.s32.totalorder %s16, 0
    %p111 = por %p109, %p110
    %p112 = scmp.le.s32.totalorder 1, %s10
    %p113 = scmp.lt.s32.totalorder %s10, 4
    %p114 = pnand %p112, %p113
    %p115 = pneg %p114
    // Predicated region
    $region9: #{tpu_custom_call.1} parent=5 // pred_check
      _
    $region10: #{tpu_custom_call.1} parent=5 // pred_check_branch
      %117 = sbr.rel (%p114) target = $region12
    $region11: #{tpu_custom_call.1} parent=5 // pred_region
      %s118 = ssub.s32 %s10, 1
      // Predicated region
      $region13: #{tpu_custom_call.1} parent=11 // pred_check
        %p119 = pneg %p31
      $region14: #{tpu_custom_call.1} parent=11 // pred_check_branch
        %121 = sbr.rel (%p119) target = $region16
      $region15: #{tpu_custom_call.1} parent=11 // pred_region
        _
      $region16: #{tpu_custom_call.1} parent=11 // pred_fallthru
        _
      // Predicated region
      $region17: #{tpu_custom_call.1} parent=11 // pred_check
        %p122 = pneg %p52
      $region18: #{tpu_custom_call.1} parent=11 // pred_check_branch
        %124 = sbr.rel (%p122) target = $region20
      $region19: #{tpu_custom_call.1} parent=11 // pred_region
        _
      $region20: #{tpu_custom_call.1} parent=11 // pred_fallthru
        _
    $region12: #{tpu_custom_call.1} parent=5 // pred_fallthru
      _
    %p125 = scmp.lt.s32.totalorder %s10, 3
    // Predicated region
    $region21: #{tpu_custom_call.1} parent=5 // pred_check
      %p126 = pneg %p125
    $region22: #{tpu_custom_call.1} parent=5 // pred_check_branch
      %128 = sbr.rel (%p126) target = $region24
    $region23: #{tpu_custom_call.1} parent=5 // pred_region
      // Predicated region
      $region25: #{tpu_custom_call.1} parent=23 // pred_check
        %p129 = pneg %p72
      $region26: #{tpu_custom_call.1} parent=23 // pred_check_branch
        %131 = sbr.rel (%p129) target = $region28
      $region27: #{tpu_custom_call.1} parent=23 // pred_region
        %s132 = smul.u32 8, %s10
        %s133 = ssub.s32 20, %s132
        %p134 = scmp.lt.s32.totalorder %s133, 8
        %s135 = scalar_select %p134, %s133, 8
        %s136 = smul.u32 64, %s135
        %p137 = scmp.lt.s32.totalorder %s132, 19
        %s138 = scalar_select %p137, %s132, 19
        %s139 = smul.addr %s138, 4
        %s140 = scalar_lea.vmem %s2, %s139
        %s141 = smul.u32 8, %s10
        %s142 = ssub.s32 20, %s141
        %p143 = scmp.lt.s32.totalorder %s142, 8
        %s144 = scalar_select %p143, %s142, 8
        %s145 = smul.u32 64, %s144
      $region28: #{tpu_custom_call.1} parent=23 // pred_fallthru
        _
    $region24: #{tpu_custom_call.1} parent=5 // pred_fallthru
      _
    %p146 = scmp.le.s32.totalorder 1, %s10
    %p147 = scmp.lt.s32.totalorder %s10, 4
    %p148 = pnand %p146, %p147
    %p149 = pneg %p148
    // Predicated region
    $region29: #{tpu_custom_call.1} parent=5 // pred_check
      _
    $region30: #{tpu_custom_call.1} parent=5 // pred_check_branch
      %151 = sbr.rel (%p148) target = $region32
    $region31: #{tpu_custom_call.1} parent=5 // pred_region
      %s152 = ssub.s32 %s10, 1
      %p153 = pneg %p31
      %p154 = pneg %p28
      %p155 = pneg %p52
      %p156 = pneg %p49
      %s157 = smul.u32 8, %s15
      %s158 = ssub.s32 20, %s157
      %p159 = scmp.lt.s32.totalorder %s158, 8
      %s160 = scalar_select %p159, %s158, 8
      %s161 = smul.u32 64, %s160
      %p162 = scmp.lt.s32.totalorder %s157, 19
      %s163 = scalar_select %p162, %s157, 19
      %s164 = smul.addr %s163, 4
      %s165 = scalar_lea.vmem %s2, %s164
      %p166 = pneg %p78
      %p167 = pneg %p75
      %p168 = pneg %p104
      %p169 = pneg %p101
      %p170 = scmp.lt.s32.totalorder %s15, 2
      %s171 = scalar_select %p170, %s15, 2
      %s172 = smul.addr %s171, 8
      %s173 = scalar_lea.vmem %s3, %s172
      %s174 = smul.u32 8, %s15
      %s175 = ssub.s32 20, %s174
      %p176 = scmp.lt.s32.totalorder %s175, 8
      %s177 = scalar_select %p176, %s175, 8
      %s178 = smul.u32 64, %s177
      %p179 = scmp.lt.s32.totalorder %s174, 19
      %s180 = scalar_select %p179, %s174, 19
      %s181 = smul.addr %s180, 4
      %s182 = scalar_lea.vmem %s2, %s181
      %s183 = smul.u32 8, %s15
      %s184 = ssub.s32 20, %s183
      %p185 = scmp.lt.s32.totalorder %s184, 8
      %s186 = scalar_select %p185, %s184, 8
      %s187 = smul.u32 64, %s186
      %p188 = scmp.lt.s32.totalorder %s15, 2
      %s189 = scalar_select %p188, %s15, 2
      %s190 = smul.addr %s189, 8
      %s191 = scalar_lea.vmem %s3, %s190
      %s192 = sld [smem:[#allocation2]]
      %v193 = vld [vmem:[%s182] sm:$0xf]
      %v194 = vld [vmem:[%s182 + $0x4] sm:$0xf]
      %v195 = vld [vmem:[%s182 + $0x8] sm:$0xf]
      %v196 = vld [vmem:[%s182 + $0xc] sm:$0xf]
      %v197 = vld [vmem:[%s182 + $0x10] sm:$0xf]
      %v198 = vld [vmem:[%s182 + $0x14] sm:$0xf]
      %v199 = vld [vmem:[%s182 + $0x18] sm:$0xf]
      %v200 = vld [vmem:[%s182 + $0x1c] sm:$0xf]
      %v201 = vunpack.c.l.bf16 %v193
      %v202 = vunpack.c.l.bf16 %v194
      %v203 = vunpack.c.l.bf16 %v195
      %v204 = vunpack.c.l.bf16 %v196
      %v205 = vunpack.c.l.bf16 %v197
      %v206 = vunpack.c.l.bf16 %v198
      %v207 = vunpack.c.l.bf16 %v199
      %v208 = vunpack.c.l.bf16 %v200
      %v209 = vld [vmem:[%s1] sm:$0xff]
      %v210 = vand.u32 2147483647, %v201
      %v211 = vand.u32 2147483647, %v202
      %v212 = vand.u32 2147483647, %v203
      %v213 = vand.u32 2147483647, %v204
      %v214 = vand.u32 2147483647, %v205
      %v215 = vand.u32 2147483647, %v206
      %v216 = vand.u32 2147483647, %v207
      %v217 = vand.u32 2147483647, %v208
      %219 = vset.pattern.permute.xlu0 0
      %220 = vperm.xlu0 %219, %v209
      %v221 = vpop.permute.xlu0 %220
      %v223 = vsub.f32 %v210, %v221
      %v224 = vsub.f32 %v211, %v221
      %v225 = vsub.f32 %v212, %v221
      %v226 = vsub.f32 %v213, %v221
      %v227 = vsub.f32 %v214, %v221
      %v228 = vsub.f32 %v215, %v221
      %v229 = vsub.f32 %v216, %v221
      %v230 = vsub.f32 %v217, %v221
      %v231 = vmax.f32 %v223, 0.0
      %v232 = vmax.f32 %v224, 0.0
      %v233 = vmax.f32 %v225, 0.0
      %v234 = vmax.f32 %v226, 0.0
      %v235 = vmax.f32 %v227, 0.0
      %v236 = vmax.f32 %v228, 0.0
      %v237 = vmax.f32 %v229, 0.0
      %v238 = vmax.f32 %v230, 0.0
      %v239 = vmul.f32 %v231, %v231
      %v240 = vmul.f32 %v232, %v232
      %v241 = vmul.f32 %v233, %v233
      %v242 = vmul.f32 %v234, %v234
      %v243 = vmul.f32 %v235, %v235
      %v244 = vmul.f32 %v236, %v236
      %v245 = vmul.f32 %v237, %v237
      %v246 = vmul.f32 %v238, %v238
      %vm247 = vcmask 31744
      %v248 = vsel %vm247, %v239, 0.0
      %249 = vadd.xlane.f32.xlu0 %v248
      %v250 = vpop.xlane.xlu0 %249
      %v251 = vsel %vm247, %v240, 0.0
      %252 = vadd.xlane.f32.xlu0 %v251
      %v253 = vpop.xlane.xlu0 %252
      %v254 = vsel %vm247, %v241, 0.0
      %255 = vadd.xlane.f32.xlu0 %v254
      %v256 = vpop.xlane.xlu0 %255
      %v257 = vsel %vm247, %v242, 0.0
      %258 = vadd.xlane.f32.xlu0 %v257
      %v259 = vpop.xlane.xlu0 %258
      %v260 = vsel %vm247, %v243, 0.0
      %261 = vadd.xlane.f32.xlu0 %v260
      %v262 = vpop.xlane.xlu0 %261
      %v263 = vsel %vm247, %v244, 0.0
      %264 = vadd.xlane.f32.xlu0 %v263
      %v265 = vpop.xlane.xlu0 %264
      %v266 = vsel %vm247, %v245, 0.0
      %267 = vadd.xlane.f32.xlu0 %v266
      %v268 = vpop.xlane.xlu0 %267
      %v269 = vsel %vm247, %v246, 0.0
      %270 = vadd.xlane.f32.xlu0 %v269
      %v271 = vpop.xlane.xlu0 %270
      %v272 = vstv %s192
      %v273 = vmul.f32 %v272, %v250
      %v274 = vmul.f32 %v272, %v253
      %v275 = vmul.f32 %v272, %v256
      %v276 = vmul.f32 %v272, %v259
      %v277 = vmul.f32 %v272, %v262
      %v278 = vmul.f32 %v272, %v265
      %v279 = vmul.f32 %v272, %v268
      %v280 = vmul.f32 %v272, %v271
      %v289 = vlaneseq
      %v290 = vand.u32 %v289, 127
      %v291 = vlaneseq
      %v292 = vshrl.u32 %v291, 7
      %v293 = vsub.s32 %v290, %v292
      %v294 = vrot.slane %v273, %v293
      %v295 = vlaneseq
      %v296 = vshrl.u32 %v295, 7
      %v297 = vsub.s32 %v290, %v296
      %v298 = vrot.slane %v274, %v297
      %v299 = vlaneseq
      %v300 = vshrl.u32 %v299, 7
      %v301 = vsub.s32 %v290, %v300
      %v302 = vrot.slane %v275, %v301
      %v303 = vlaneseq
      %v304 = vshrl.u32 %v303, 7
      %v305 = vsub.s32 %v290, %v304
      %v306 = vrot.slane %v276, %v305
      %v307 = vlaneseq
      %v308 = vshrl.u32 %v307, 7
      %v309 = vsub.s32 %v290, %v308
      %v310 = vrot.slane %v277, %v309
      %v311 = vlaneseq
      %v312 = vshrl.u32 %v311, 7
      %v313 = vsub.s32 %v290, %v312
      %v314 = vrot.slane %v278, %v313
      %v315 = vlaneseq
      %v316 = vshrl.u32 %v315, 7
      %v317 = vsub.s32 %v290, %v316
      %v318 = vrot.slane %v279, %v317
      %v319 = vlaneseq
      %v320 = vshrl.u32 %v319, 7
      %v321 = vsub.s32 %v290, %v320
      %v322 = vrot.slane %v280, %v321
      %vm323 = vcmask 1041409
      %v324 = vsel %vm323, %v298, %v294
      %vm325 = vcmask 1042434
      %v326 = vsel %vm325, %v302, %v324
      %vm327 = vcmask 1043459
      %v328 = vsel %vm327, %v306, %v326
      %vm329 = vcmask 1044484
      %v330 = vsel %vm329, %v310, %v328
      %vm331 = vcmask 1045509
      %v332 = vsel %vm331, %v314, %v330
      %vm333 = vcmask 1046534
      %v334 = vsel %vm333, %v318, %v332
      %vm335 = vcmask 1047559
      %v336 = vsel %vm335, %v322, %v334
      %vm338 = vcmask 64512
      %339 = vst.msk [vmem:[%s191] sm:$0xff] %vm338, %v336
      %p340 = scmp.lt.s32.totalorder %s15, 2
      %s341 = scalar_select %p340, %s15, 2
      %s342 = smul.addr %s341, 8
      %s343 = scalar_lea.vmem %s3, %s342
      // Predicated region
      $region33: #{tpu_custom_call.1} parent=31 // pred_check
        %p344 = pneg %p101
      $region34: #{tpu_custom_call.1} parent=31 // pred_check_branch
        %346 = sbr.rel (%p344) target = $region36
      $region35: #{tpu_custom_call.1} parent=31 // pred_region
        _
      $region36: #{tpu_custom_call.1} parent=31 // pred_fallthru
        _
    $region32: #{tpu_custom_call.1} parent=5 // pred_fallthru
      _
    %p347 = scmp.le.s32.totalorder 2, %s10
    // Predicated region
    $region37: #{tpu_custom_call.1} parent=5 // pred_check
      %p348 = pneg %p347
    $region38: #{tpu_custom_call.1} parent=5 // pred_check_branch
      %350 = sbr.rel (%p348) target = $region40
    $region39: #{tpu_custom_call.1} parent=5 // pred_region
      %s351 = ssub.s32 %s10, 2
      // Predicated region
      $region41: #{tpu_custom_call.1} parent=39 // pred_check
        %p352 = pneg %p107
      $region42: #{tpu_custom_call.1} parent=39 // pred_check_branch
        %354 = sbr.rel (%p352) target = $region44
      $region43: #{tpu_custom_call.1} parent=39 // pred_region
        %p355 = scmp.lt.s32.totalorder %s16, 2
        %s356 = scalar_select %p355, %s16, 2
        %s357 = smul.addr %s356, 8
        %s358 = scalar_lea.vmem %s3, %s357
      $region44: #{tpu_custom_call.1} parent=39 // pred_fallthru
        _
    $region40: #{tpu_custom_call.1} parent=5 // pred_fallthru
      _
  $region6: #{tpu_custom_call.1} parent=0 // loop_footer
    %s14 = sadd.s32 1, %s10
  $region7: #{tpu_custom_call.1} parent=0 // loop_footer_branch
    %9 = sbr.rel target = $region3
  $region8: #{tpu_custom_call.1} parent=0 // loop_exit
    _

</llo_original>
